<compile_context>
chip_gen: v5e
topology: v5e:2x2
jax: 0.10.0
libtpu: 0.0.40
codegen_flags: <defaults>
</compile_context>

<pallas_src>
import functools

import jax
import jax.numpy as jnp
from jax.experimental import pallas as pl
from jax.experimental.pallas import tpu as pltpu

EPS = 1e-5


def resblock_kernel(x_ref, w1_ref, w2_ref, gsum_ref, g1_ref, b1_ref,
                    g2_ref, b2_ref, out_ref, *, H, inv_cnt):
    M, L = x_ref.shape
    x = x_ref[...]                                        # (M, L) lane-dense

    row = jax.lax.broadcasted_iota(jnp.int32, (M, L), 0)
    at_top = (row % H) == 0          # h == 0   -> row h-1 is outside the image
    at_bot = (row % H) == (H - 1)    # h == H-1 -> row h+1 is outside the image

    zrow = jnp.zeros((1, L), jnp.float32)

    def conv3x3(v, w_ref):
        # dy taps: three row-shifted slabs (zero outside each image).
        dn = jnp.where(at_top, 0.0,
                       jnp.concatenate([zrow, v[:M - 1, :]], axis=0))  # row h-1
        up = jnp.where(at_bot, 0.0,
                       jnp.concatenate([v[1:, :], zrow], axis=0))      # row h+1
        # dx taps live inside the block-tridiagonal weight -> single matmul.
        patches = jnp.concatenate([dn, v, up], axis=-1)                # (M, 3L)
        return jnp.dot(patches, w_ref[...],
                       preferred_element_type=jnp.float32)             # (M, L)

    def batchnorm(a, g_ref, b_ref):
        # Single pass over the accumulator: sum and sum-of-squares, then one
        # reduce+broadcast matmul turns per-lane partials into per-channel
        # statistics replicated across every W group.
        stats = jnp.concatenate(
            [jnp.sum(a, axis=0, keepdims=True),
             jnp.sum(a * a, axis=0, keepdims=True)], axis=0)           # (2, L)
        red = jnp.dot(stats, gsum_ref[...],
                      preferred_element_type=jnp.float32) * inv_cnt
        mean = red[0:1, :]
        var = jnp.maximum(red[1:2, :] - mean * mean, 0.0)
        return (a - mean) * jax.lax.rsqrt(var + EPS) * g_ref[...] + b_ref[...]

    h = jnp.maximum(batchnorm(conv3x3(x, w1_ref), g1_ref, b1_ref), 0.0)
    h2 = batchnorm(conv3x3(h, w2_ref), g2_ref, b2_ref)
    out_ref[...] = jnp.maximum(h2 + x, 0.0)               # residual add + relu


def _block_weight(w9, W, C):
    """(9, Cin, Cout) tap weights -> (3*W*C, W*C) block-tridiagonal matrix.

    Row block ky in {0,1,2} multiplies the row-shifted slab for input row
    h+ky-1; within each block, tap kx sits on the (w_in = w_out + kx - 1)
    block diagonal, which also encodes the zero padding along W.
    """
    blocks = []
    for ky in range(3):
        blk = jnp.zeros((W * C, W * C), jnp.float32)
        for kx in range(3):
            off = kx - 1                                   # w_in - w_out
            sel = jnp.eye(W, k=-off, dtype=jnp.float32)    # sel[w_in, w_out]
            blk = blk + jnp.kron(sel, w9[ky * 3 + kx].astype(jnp.float32))
        blocks.append(blk)
    return jnp.concatenate(blocks, axis=0)


def resblock_pallas(x_nhwc, w1, g1, b1, w2, g2, b2):
    """x_nhwc: (N,H,W,C) f32; w*: (9, Cin, Cout); g*, b*: (1, Cout)."""
    N, H, W, C = x_nhwc.shape
    Cout = w1.shape[-1]
    assert Cout == C, "residual add requires in_channels == out_channels"
    L = W * C
    assert L % 128 == 0, "lane-dense layout needs W*C to be a multiple of 128"
    assert (N * H) % 8 == 0, "sublane layout wants N*H to be a multiple of 8"
    M = N * H

    x2d = x_nhwc.reshape(M, L)                        # lane-dense slab
    w1b = _block_weight(w1, W, C)                     # (3L, L)
    w2b = _block_weight(w2, W, C)
    gsum = jnp.kron(jnp.ones((W, W), jnp.float32),
                    jnp.eye(C, dtype=jnp.float32))    # (L, L) reduce+broadcast
    g1b = jnp.tile(g1.reshape(1, C).astype(jnp.float32), (1, W))
    b1b = jnp.tile(b1.reshape(1, C).astype(jnp.float32), (1, W))
    g2b = jnp.tile(g2.reshape(1, C).astype(jnp.float32), (1, W))
    b2b = jnp.tile(b2.reshape(1, C).astype(jnp.float32), (1, W))

    kernel = functools.partial(resblock_kernel, H=H, inv_cnt=1.0 / (N * H * W))
    vmem = pl.BlockSpec(memory_space=pltpu.MemorySpace.VMEM)

    flops = 2 * (2 * M * (3 * L) * L) + 2 * (2 * 2 * L * L)
    bytes_accessed = 4 * (x2d.size + w1b.size + w2b.size + gsum.size
                          + 4 * L + M * L)

    # TODO(synk): for real ResNet-scale shapes, tile H with 1-row halos via a
    # grid marked "parallel" (v7x megacore) plus a two-pass cross-tile
    # reduction for the global BN batch statistics, and size vmem_limit_bytes
    # from the tiles; at this size a grid is pure per-step overhead.
    out2d = pl.pallas_call(
        kernel,
        out_shape=jax.ShapeDtypeStruct((M, L), jnp.float32),
        in_specs=[vmem] * 8,
        out_specs=vmem,
        cost_estimate=pl.CostEstimate(
            flops=int(flops), transcendentals=0,
            bytes_accessed=int(bytes_accessed)),
    )(x2d, w1b, w2b, gsum, g1b, b1b, g2b, b2b)
    return out2d.reshape(N, H, W, C)


def resblock_ref(x_nhwc, w1, g1, b1, w2, g2, b2):
    """Pure-JAX reference (matches PyTorch training-mode forward)."""
    def conv(x, w9):
        w = w9.reshape(3, 3, w9.shape[1], w9.shape[2])  # HWIO
        return jax.lax.conv_general_dilated(
            x, w, window_strides=(1, 1), padding="SAME",
            dimension_numbers=("NHWC", "HWIO", "NHWC"))

    def bn(y, g, b):
        mean = y.mean(axis=(0, 1, 2), keepdims=True)
        var = ((y - mean) ** 2).mean(axis=(0, 1, 2), keepdims=True)
        return (y - mean) * jax.lax.rsqrt(var + EPS) * g.reshape(1, 1, 1, -1) \
            + b.reshape(1, 1, 1, -1)

    h = jax.nn.relu(bn(conv(x_nhwc, w1), g1, b1))
    h = bn(conv(h, w2), g2, b2)
    return jax.nn.relu(h + x_nhwc)


if __name__ == "__main__":
    # ResBlock(in_channels=C, out_channels=C, stride=1): residual add requires
    # in_channels == out_channels.  W*C = 16*8 = 128 -> fully lane-dense slab.
    N, C, H, W = 2, 8, 16, 16

    key = jax.random.PRNGKey(0)
    kx, kw1, kw2, kg1, kb1, kg2, kb2 = jax.random.split(key, 7)

    # PyTorch-side input is NCHW; transpose to NHWC for the kernel wrapper.
    x_nchw = jax.random.normal(kx, (N, C, H, W), jnp.float32)
    x_nhwc = jnp.transpose(x_nchw, (0, 2, 3, 1))

    # conv weights: PyTorch (Cout, Cin, 3, 3) -> (3, 3, Cin, Cout) -> (9, Cin, Cout)
    def make_w(k):
        w_pt = jax.random.normal(k, (C, C, 3, 3), jnp.float32) * 0.1
        return jnp.transpose(w_pt, (2, 3, 1, 0)).reshape(9, C, C)

    w1 = make_w(kw1)
    w2 = make_w(kw2)
    g1 = 1.0 + 0.1 * jax.random.normal(kg1, (1, C), jnp.float32)
    b1 = 0.1 * jax.random.normal(kb1, (1, C), jnp.float32)
    g2 = 1.0 + 0.1 * jax.random.normal(kg2, (1, C), jnp.float32)
    b2 = 0.1 * jax.random.normal(kb2, (1, C), jnp.float32)

    out = resblock_pallas(x_nhwc, w1, g1, b1, w2, g2, b2)
    out = jax.block_until_ready(out)

    ref = resblock_ref(x_nhwc, w1, g1, b1, w2, g2, b2)
    assert out.shape == (N, H, W, C)
    assert jnp.allclose(out, ref, atol=1e-3, rtol=1e-3), \
        f"max abs err {jnp.max(jnp.abs(out - ref))}"

    print("KERNEL_OK")
</pallas_src>

<mosaic_0001>
module attributes {stable_mosaic.version = 11 : i64} {
  func.func @resblock_kernel(%arg0: memref<32x128xf32, #tpu.memory_space<vmem>>, %arg1: memref<384x128xf32, #tpu.memory_space<vmem>>, %arg2: memref<384x128xf32, #tpu.memory_space<vmem>>, %arg3: memref<128x128xf32, #tpu.memory_space<vmem>>, %arg4: memref<1x128xf32, #tpu.memory_space<vmem>>, %arg5: memref<1x128xf32, #tpu.memory_space<vmem>>, %arg6: memref<1x128xf32, #tpu.memory_space<vmem>>, %arg7: memref<1x128xf32, #tpu.memory_space<vmem>>, %arg8: memref<32x128xf32, #tpu.memory_space<vmem>>) attributes {dimension_semantics = [], scalar_prefetch = 0 : i64, scratch_operands = 0 : i64, tpu.core_type = #tpu.core_type<tc>} {
    %c0 = arith.constant 0 : index
    %c0_0 = arith.constant 0 : index
    %0 = vector.load %arg0[%c0, %c0_0] : memref<32x128xf32, #tpu.memory_space<vmem>>, vector<32x128xf32>
    %1 = tpu.iota {dimensions = array<i32: 0>} : vector<32x128xi32>
    %c16_i32 = arith.constant 16 : i32
    %c0_i32 = arith.constant 0 : i32
    %2 = arith.cmpi eq, %c16_i32, %c0_i32 : i32
    %c1_i32 = arith.constant 1 : i32
    %3 = arith.select %2, %c1_i32, %c16_i32 : i32
    %4 = vector.broadcast %3 : i32 to vector<32x128xi32>
    %5 = arith.remsi %1, %4 : vector<32x128xi32>
    %c0_i32_1 = arith.constant 0 : i32
    %6 = vector.broadcast %c0_i32_1 : i32 to vector<32x128xi32>
    %7 = arith.cmpi ne, %5, %6 : vector<32x128xi32>
    %c0_i32_2 = arith.constant 0 : i32
    %8 = vector.broadcast %c0_i32_2 : i32 to vector<32x128xi32>
    %9 = arith.cmpi slt, %5, %8 : vector<32x128xi32>
    %c0_i32_3 = arith.constant 0 : i32
    %10 = arith.cmpi slt, %3, %c0_i32_3 : i32
    %11 = vector.broadcast %10 : i1 to vector<32x128xi1>
    %12 = vector.broadcast %11 : vector<32x128xi1> to vector<32x128xi1>
    %13 = arith.xori %9, %12 : vector<32x128xi1>
    %14 = arith.andi %13, %7 : vector<32x128xi1>
    %15 = vector.broadcast %3 : i32 to vector<32x128xi32>
    %16 = arith.addi %5, %15 : vector<32x128xi32>
    %17 = arith.select %14, %16, %5 : vector<32x128xi1>, vector<32x128xi32>
    %c0_i32_4 = arith.constant 0 : i32
    %18 = vector.broadcast %c0_i32_4 : i32 to vector<32x128xi32>
    %19 = arith.cmpi eq, %17, %18 : vector<32x128xi32>
    %c16_i32_5 = arith.constant 16 : i32
    %c0_i32_6 = arith.constant 0 : i32
    %20 = arith.cmpi eq, %c16_i32_5, %c0_i32_6 : i32
    %c1_i32_7 = arith.constant 1 : i32
    %21 = arith.select %20, %c1_i32_7, %c16_i32_5 : i32
    %22 = vector.broadcast %21 : i32 to vector<32x128xi32>
    %23 = arith.remsi %1, %22 : vector<32x128xi32>
    %c0_i32_8 = arith.constant 0 : i32
    %24 = vector.broadcast %c0_i32_8 : i32 to vector<32x128xi32>
    %25 = arith.cmpi ne, %23, %24 : vector<32x128xi32>
    %c0_i32_9 = arith.constant 0 : i32
    %26 = vector.broadcast %c0_i32_9 : i32 to vector<32x128xi32>
    %27 = arith.cmpi slt, %23, %26 : vector<32x128xi32>
    %c0_i32_10 = arith.constant 0 : i32
    %28 = arith.cmpi slt, %21, %c0_i32_10 : i32
    %29 = vector.broadcast %28 : i1 to vector<32x128xi1>
    %30 = vector.broadcast %29 : vector<32x128xi1> to vector<32x128xi1>
    %31 = arith.xori %27, %30 : vector<32x128xi1>
    %32 = arith.andi %31, %25 : vector<32x128xi1>
    %33 = vector.broadcast %21 : i32 to vector<32x128xi32>
    %34 = arith.addi %23, %33 : vector<32x128xi32>
    %35 = arith.select %32, %34, %23 : vector<32x128xi1>, vector<32x128xi32>
    %c15_i32 = arith.constant 15 : i32
    %36 = vector.broadcast %c15_i32 : i32 to vector<32x128xi32>
    %37 = arith.cmpi eq, %35, %36 : vector<32x128xi32>
    %cst = arith.constant 0.000000e+00 : f32
    %38 = vector.broadcast %cst : f32 to vector<1x128xf32>
    %39 = vector.extract_strided_slice %0 {offsets = [0, 0], sizes = [31, 128], strides = [1, 1]} : vector<32x128xf32> to vector<31x128xf32>
    %40 = tpu.concatenate %38, %39 in 0 : vector<1x128xf32>, vector<31x128xf32> -> vector<32x128xf32>
    %cst_11 = arith.constant 0.000000e+00 : f32
    %41 = vector.broadcast %cst_11 : f32 to vector<32x128xf32>
    %42 = arith.select %19, %41, %40 : vector<32x128xi1>, vector<32x128xf32>
    %43 = vector.extract_strided_slice %0 {offsets = [1, 0], sizes = [31, 128], strides = [1, 1]} : vector<32x128xf32> to vector<31x128xf32>
    %44 = tpu.concatenate %43, %38 in 0 : vector<31x128xf32>, vector<1x128xf32> -> vector<32x128xf32>
    %cst_12 = arith.constant 0.000000e+00 : f32
    %45 = vector.broadcast %cst_12 : f32 to vector<32x128xf32>
    %46 = arith.select %37, %45, %44 : vector<32x128xi1>, vector<32x128xf32>
    %47 = tpu.concatenate %42, %0, %46 in 1 : vector<32x128xf32>, vector<32x128xf32>, vector<32x128xf32> -> vector<32x384xf32>
    %c0_13 = arith.constant 0 : index
    %c0_14 = arith.constant 0 : index
    %48 = vector.load %arg1[%c0_13, %c0_14] : memref<384x128xf32, #tpu.memory_space<vmem>>, vector<384x128xf32>
    %cst_15 = arith.constant dense<0.000000e+00> : vector<32x128xf32>
    %49 = tpu.matmul %47, %48, %cst_15 {dimension_numbers = #tpu.dot_dimension_numbers<[1], [0], [0], [1], [0, 0, 1, 1], [], []>} : vector<32x384xf32>, vector<384x128xf32>, vector<32x128xf32> -> vector<32x128xf32>
    %cst_16 = arith.constant dense<0.000000e+00> : vector<128xf32>
    %50 = vector.multi_reduction <add>, %49, %cst_16 [0] : vector<32x128xf32> to vector<128xf32>
    %51 = vector.shape_cast %50 : vector<128xf32> to vector<1x128xf32>
    %52 = arith.mulf %49, %49 : vector<32x128xf32>
    %cst_17 = arith.constant dense<0.000000e+00> : vector<128xf32>
    %53 = vector.multi_reduction <add>, %52, %cst_17 [0] : vector<32x128xf32> to vector<128xf32>
    %54 = vector.shape_cast %53 : vector<128xf32> to vector<1x128xf32>
    %55 = tpu.concatenate %51, %54 in 0 : vector<1x128xf32>, vector<1x128xf32> -> vector<2x128xf32>
    %c0_18 = arith.constant 0 : index
    %c0_19 = arith.constant 0 : index
    %56 = vector.load %arg3[%c0_18, %c0_19] : memref<128x128xf32, #tpu.memory_space<vmem>>, vector<128x128xf32>
    %cst_20 = arith.constant dense<0.000000e+00> : vector<2x128xf32>
    %57 = tpu.matmul %55, %56, %cst_20 {dimension_numbers = #tpu.dot_dimension_numbers<[1], [0], [0], [1], [0, 0, 1, 1], [], []>} : vector<2x128xf32>, vector<128x128xf32>, vector<2x128xf32> -> vector<2x128xf32>
    %cst_21 = arith.constant 0.001953125 : f32
    %58 = vector.broadcast %cst_21 : f32 to vector<2x128xf32>
    %59 = arith.mulf %57, %58 : vector<2x128xf32>
    %60 = vector.extract_strided_slice %59 {offsets = [0, 0], sizes = [1, 128], strides = [1, 1]} : vector<2x128xf32> to vector<1x128xf32>
    %61 = vector.extract_strided_slice %59 {offsets = [1, 0], sizes = [1, 128], strides = [1, 1]} : vector<2x128xf32> to vector<1x128xf32>
    %62 = arith.mulf %60, %60 : vector<1x128xf32>
    %63 = arith.subf %61, %62 : vector<1x128xf32>
    %cst_22 = arith.constant 0.000000e+00 : f32
    %64 = vector.broadcast %cst_22 : f32 to vector<1x128xf32>
    %65 = arith.maximumf %63, %64 : vector<1x128xf32>
    %66 = vector.broadcast %60 : vector<1x128xf32> to vector<32x128xf32>
    %67 = arith.subf %49, %66 : vector<32x128xf32>
    %cst_23 = arith.constant 9.99999974E-6 : f32
    %68 = vector.broadcast %cst_23 : f32 to vector<1x128xf32>
    %69 = arith.addf %65, %68 : vector<1x128xf32>
    %70 = math.rsqrt %69 : vector<1x128xf32>
    %71 = vector.broadcast %70 : vector<1x128xf32> to vector<32x128xf32>
    %72 = arith.mulf %67, %71 : vector<32x128xf32>
    %c0_24 = arith.constant 0 : index
    %c0_25 = arith.constant 0 : index
    %73 = vector.load %arg4[%c0_24, %c0_25] : memref<1x128xf32, #tpu.memory_space<vmem>>, vector<1x128xf32>
    %74 = vector.broadcast %73 : vector<1x128xf32> to vector<32x128xf32>
    %75 = arith.mulf %72, %74 : vector<32x128xf32>
    %c0_26 = arith.constant 0 : index
    %c0_27 = arith.constant 0 : index
    %76 = vector.load %arg5[%c0_26, %c0_27] : memref<1x128xf32, #tpu.memory_space<vmem>>, vector<1x128xf32>
    %77 = vector.broadcast %76 : vector<1x128xf32> to vector<32x128xf32>
    %78 = arith.addf %75, %77 : vector<32x128xf32>
    %cst_28 = arith.constant 0.000000e+00 : f32
    %79 = vector.broadcast %cst_28 : f32 to vector<32x128xf32>
    %80 = arith.maximumf %78, %79 : vector<32x128xf32>
    %81 = vector.extract_strided_slice %80 {offsets = [0, 0], sizes = [31, 128], strides = [1, 1]} : vector<32x128xf32> to vector<31x128xf32>
    %82 = tpu.concatenate %38, %81 in 0 : vector<1x128xf32>, vector<31x128xf32> -> vector<32x128xf32>
    %cst_29 = arith.constant 0.000000e+00 : f32
    %83 = vector.broadcast %cst_29 : f32 to vector<32x128xf32>
    %84 = arith.select %19, %83, %82 : vector<32x128xi1>, vector<32x128xf32>
    %85 = vector.extract_strided_slice %80 {offsets = [1, 0], sizes = [31, 128], strides = [1, 1]} : vector<32x128xf32> to vector<31x128xf32>
    %86 = tpu.concatenate %85, %38 in 0 : vector<31x128xf32>, vector<1x128xf32> -> vector<32x128xf32>
    %cst_30 = arith.constant 0.000000e+00 : f32
    %87 = vector.broadcast %cst_30 : f32 to vector<32x128xf32>
    %88 = arith.select %37, %87, %86 : vector<32x128xi1>, vector<32x128xf32>
    %89 = tpu.concatenate %84, %80, %88 in 1 : vector<32x128xf32>, vector<32x128xf32>, vector<32x128xf32> -> vector<32x384xf32>
    %c0_31 = arith.constant 0 : index
    %c0_32 = arith.constant 0 : index
    %90 = vector.load %arg2[%c0_31, %c0_32] : memref<384x128xf32, #tpu.memory_space<vmem>>, vector<384x128xf32>
    %cst_33 = arith.constant dense<0.000000e+00> : vector<32x128xf32>
    %91 = tpu.matmul %89, %90, %cst_33 {dimension_numbers = #tpu.dot_dimension_numbers<[1], [0], [0], [1], [0, 0, 1, 1], [], []>} : vector<32x384xf32>, vector<384x128xf32>, vector<32x128xf32> -> vector<32x128xf32>
    %cst_34 = arith.constant dense<0.000000e+00> : vector<128xf32>
    %92 = vector.multi_reduction <add>, %91, %cst_34 [0] : vector<32x128xf32> to vector<128xf32>
    %93 = vector.shape_cast %92 : vector<128xf32> to vector<1x128xf32>
    %94 = arith.mulf %91, %91 : vector<32x128xf32>
    %cst_35 = arith.constant dense<0.000000e+00> : vector<128xf32>
    %95 = vector.multi_reduction <add>, %94, %cst_35 [0] : vector<32x128xf32> to vector<128xf32>
    %96 = vector.shape_cast %95 : vector<128xf32> to vector<1x128xf32>
    %97 = tpu.concatenate %93, %96 in 0 : vector<1x128xf32>, vector<1x128xf32> -> vector<2x128xf32>
    %c0_36 = arith.constant 0 : index
    %c0_37 = arith.constant 0 : index
    %98 = vector.load %arg3[%c0_36, %c0_37] : memref<128x128xf32, #tpu.memory_space<vmem>>, vector<128x128xf32>
    %cst_38 = arith.constant dense<0.000000e+00> : vector<2x128xf32>
    %99 = tpu.matmul %97, %98, %cst_38 {dimension_numbers = #tpu.dot_dimension_numbers<[1], [0], [0], [1], [0, 0, 1, 1], [], []>} : vector<2x128xf32>, vector<128x128xf32>, vector<2x128xf32> -> vector<2x128xf32>
    %cst_39 = arith.constant 0.001953125 : f32
    %100 = vector.broadcast %cst_39 : f32 to vector<2x128xf32>
    %101 = arith.mulf %99, %100 : vector<2x128xf32>
    %102 = vector.extract_strided_slice %101 {offsets = [0, 0], sizes = [1, 128], strides = [1, 1]} : vector<2x128xf32> to vector<1x128xf32>
    %103 = vector.extract_strided_slice %101 {offsets = [1, 0], sizes = [1, 128], strides = [1, 1]} : vector<2x128xf32> to vector<1x128xf32>
    %104 = arith.mulf %102, %102 : vector<1x128xf32>
    %105 = arith.subf %103, %104 : vector<1x128xf32>
    %cst_40 = arith.constant 0.000000e+00 : f32
    %106 = vector.broadcast %cst_40 : f32 to vector<1x128xf32>
    %107 = arith.maximumf %105, %106 : vector<1x128xf32>
    %108 = vector.broadcast %102 : vector<1x128xf32> to vector<32x128xf32>
    %109 = arith.subf %91, %108 : vector<32x128xf32>
    %cst_41 = arith.constant 9.99999974E-6 : f32
    %110 = vector.broadcast %cst_41 : f32 to vector<1x128xf32>
    %111 = arith.addf %107, %110 : vector<1x128xf32>
    %112 = math.rsqrt %111 : vector<1x128xf32>
    %113 = vector.broadcast %112 : vector<1x128xf32> to vector<32x128xf32>
    %114 = arith.mulf %109, %113 : vector<32x128xf32>
    %c0_42 = arith.constant 0 : index
    %c0_43 = arith.constant 0 : index
    %115 = vector.load %arg6[%c0_42, %c0_43] : memref<1x128xf32, #tpu.memory_space<vmem>>, vector<1x128xf32>
    %116 = vector.broadcast %115 : vector<1x128xf32> to vector<32x128xf32>
    %117 = arith.mulf %114, %116 : vector<32x128xf32>
    %c0_44 = arith.constant 0 : index
    %c0_45 = arith.constant 0 : index
    %118 = vector.load %arg7[%c0_44, %c0_45] : memref<1x128xf32, #tpu.memory_space<vmem>>, vector<1x128xf32>
    %119 = vector.broadcast %118 : vector<1x128xf32> to vector<32x128xf32>
    %120 = arith.addf %117, %119 : vector<32x128xf32>
    %121 = arith.addf %120, %0 : vector<32x128xf32>
    %cst_46 = arith.constant 0.000000e+00 : f32
    %122 = vector.broadcast %cst_46 : f32 to vector<32x128xf32>
    %123 = arith.maximumf %121, %122 : vector<32x128xf32>
    %c0_47 = arith.constant 0 : index
    %c0_48 = arith.constant 0 : index
    %124 = vector.load %arg8[%c0_47, %c0_48] : memref<32x128xf32, #tpu.memory_space<vmem>>, vector<32x128xf32>
    tpu.vector_store %arg8[%c0_47, %c0_48], %123 {strides = array<i32>} : memref<32x128xf32, #tpu.memory_space<vmem>>, vector<32x128xf32>,
    return
  }
}

</mosaic_0001>

<llo_original>
// kernel: tpu_custom_call.1
$region0: #{tpu_custom_call.1}
  #allocation0 [shape = 'u32[]', space=smem, size = 0x4, offset = 0x4, fixed_abs, tag = 'smem constant byte address 0x4 - core index']
  #allocation1 [shape = 'u32[72,128]{1,0:T(1,128)}', space=vmem, size = 0x9000, scoped, tag = 'internal scratch']
  %s0 = inlined_call_operand.hbm [shape: f32[32,128], index: 0, kind: input, shape index: {}]
  %s1 = inlined_call_operand.hbm [shape: f32[384,128], index: 1, kind: input, shape index: {}]
  %s2 = inlined_call_operand.hbm [shape: f32[384,128], index: 2, kind: input, shape index: {}]
  %s3 = inlined_call_operand.hbm [shape: f32[128,128], index: 3, kind: input, shape index: {}]
  %s4 = inlined_call_operand.vmem [shape: f32[1,128], index: 4, kind: input, shape index: {}]
  %s5 = inlined_call_operand.vmem [shape: f32[1,128], index: 5, kind: input, shape index: {}]
  %s6 = inlined_call_operand.vmem [shape: f32[1,128], index: 6, kind: input, shape index: {}]
  %s7 = inlined_call_operand.vmem [shape: f32[1,128], index: 7, kind: input, shape index: {}]
  %s8 = inlined_call_operand.hbm [shape: f32[32,128], index: 8, kind: output, shape index: {}]
  %s9 = sld [smem:[#allocation0]]
  $region58: #{tpu_custom_call.1} parent=0
    _
  %s11 = ssub.s32 1, %s9
  %s12 = scalar_select 0, %s11, %s9
  $region1: #{tpu_custom_call.1} parent=0
    #allocation2 [shape = 'u8[16384]{0}', space=vmem, size = 0x4000, scoped, tag = 'input window, operand 0, single buffered']
    #allocation3 [shape = 's32[1]{0}', space=sflag, size = 0x4, scoped, tag = 'scoped memory for tpu_custom_call.1']
    #allocation4 [shape = 's32[1]{0}', space=sflag, size = 0x4, scoped, tag = 'scoped memory for tpu_custom_call.1']
    #allocation5 [shape = 'u8[196608]{0}', space=vmem, size = 0x30000, scoped, tag = 'input window, operand 1, single buffered']
    #allocation6 [shape = 's32[1]{0}', space=sflag, size = 0x4, scoped, tag = 'scoped memory for tpu_custom_call.1']
    #allocation7 [shape = 'u8[196608]{0}', space=vmem, size = 0x30000, scoped, tag = 'input window, operand 2, single buffered']
    #allocation8 [shape = 'u8[65536]{0}', space=vmem, size = 0x10000, scoped, tag = 'input window, operand 3, single buffered']
    #allocation9 [shape = 's32[1]{0}', space=sflag, size = 0x4, scoped, tag = 'scoped memory for tpu_custom_call.1']
    #allocation10 [shape = 'u8[16384]{0}', space=vmem, size = 0x4000, scoped, tag = 'output window, operand 0, single buffered']
    %13 = vsyncpa [#allocation3], 0
    %14 = vsyncpa [#allocation6], 0
    %15 = vsyncpa [#allocation9], 0
    %16 = vsyncpa [#allocation4], 0
    // Predicated region
    $region2: #{tpu_custom_call.1} parent=1 // pred_check
      _
    $region3: #{tpu_custom_call.1} parent=1 // pred_check_branch
      %18 = sbr.rel (0) target = $region5
    $region4: #{tpu_custom_call.1} parent=1 // pred_region
      %20 = vsyncadd [#allocation3], 0
      %s21 = sshll.u32 %s0, 4
      %s22 = int_to_ptr.hbm [resolvable:$true] %s21
      %s23 = sshll.u32 [#allocation2], 4
      %s24 = int_to_ptr.vmem [resolvable:$true] %s23
      %29 = dma.hbm_to_vmem [thread:$0]  %s22, 512, %s24, [#allocation3], 128, 128, 8
    $region5: #{tpu_custom_call.1} parent=1 // pred_fallthru
      _
    // Predicated region
    $region6: #{tpu_custom_call.1} parent=1 // pred_check
      _
    $region7: #{tpu_custom_call.1} parent=1 // pred_check_branch
      %31 = sbr.rel (0) target = $region9
    $region8: #{tpu_custom_call.1} parent=1 // pred_region
      %33 = vsyncadd [#allocation6], 0
      %s34 = sshll.u32 %s1, 4
      %s35 = int_to_ptr.hbm [resolvable:$true] %s34
      %s36 = sshll.u32 [#allocation5], 4
      %s37 = int_to_ptr.vmem [resolvable:$true] %s36
      %42 = dma.hbm_to_vmem [thread:$0]  %s35, 6144, %s37, [#allocation6], 128, 128, 8
    $region9: #{tpu_custom_call.1} parent=1 // pred_fallthru
      _
    // Predicated region
    $region10: #{tpu_custom_call.1} parent=1 // pred_check
      _
    $region11: #{tpu_custom_call.1} parent=1 // pred_check_branch
      %44 = sbr.rel (0) target = $region13
    $region12: #{tpu_custom_call.1} parent=1 // pred_region
      %46 = vsyncadd [#allocation6], 0
      %s47 = sshll.u32 %s2, 4
      %s48 = int_to_ptr.hbm [resolvable:$true] %s47
      %s49 = sshll.u32 [#allocation7], 4
      %s50 = int_to_ptr.vmem [resolvable:$true] %s49
      %55 = dma.hbm_to_vmem [thread:$0]  %s48, 6144, %s50, [#allocation6], 128, 128, 8
    $region13: #{tpu_custom_call.1} parent=1 // pred_fallthru
      _
    // Predicated region
    $region14: #{tpu_custom_call.1} parent=1 // pred_check
      _
    $region15: #{tpu_custom_call.1} parent=1 // pred_check_branch
      %57 = sbr.rel (0) target = $region17
    $region16: #{tpu_custom_call.1} parent=1 // pred_region
      %59 = vsyncadd [#allocation9], 0
      %s60 = sshll.u32 %s3, 4
      %s61 = int_to_ptr.hbm [resolvable:$true] %s60
      %s62 = sshll.u32 [#allocation8], 4
      %s63 = int_to_ptr.vmem [resolvable:$true] %s62
      %68 = dma.hbm_to_vmem [thread:$0]  %s61, 2048, %s63, [#allocation9], 128, 128, 8
    $region17: #{tpu_custom_call.1} parent=1 // pred_fallthru
      _
    // Predicated region
    $region18: #{tpu_custom_call.1} parent=1 // pred_check
      _
    $region19: #{tpu_custom_call.1} parent=1 // pred_check_branch
      %70 = sbr.rel (0) target = $region21
    $region20: #{tpu_custom_call.1} parent=1 // pred_region
      _
    $region21: #{tpu_custom_call.1} parent=1 // pred_fallthru
      _
    // Predicated region
    $region22: #{tpu_custom_call.1} parent=1 // pred_check
      _
    $region23: #{tpu_custom_call.1} parent=1 // pred_check_branch
      %72 = sbr.rel (0) target = $region25
    $region24: #{tpu_custom_call.1} parent=1 // pred_region
      _
    $region25: #{tpu_custom_call.1} parent=1 // pred_fallthru
      _
    // Predicated region
    $region26: #{tpu_custom_call.1} parent=1 // pred_check
      _
    $region27: #{tpu_custom_call.1} parent=1 // pred_check_branch
      %74 = sbr.rel (0) target = $region29
    $region28: #{tpu_custom_call.1} parent=1 // pred_region
      _
    $region29: #{tpu_custom_call.1} parent=1 // pred_fallthru
      _
    // Predicated region
    $region30: #{tpu_custom_call.1} parent=1 // pred_check
      _
    $region31: #{tpu_custom_call.1} parent=1 // pred_check_branch
      %76 = sbr.rel (0) target = $region33
    $region32: #{tpu_custom_call.1} parent=1 // pred_region
      _
    $region33: #{tpu_custom_call.1} parent=1 // pred_fallthru
      _
    // Predicated region
    $region34: #{tpu_custom_call.1} parent=1 // pred_check
      _
    $region35: #{tpu_custom_call.1} parent=1 // pred_check_branch
      %78 = sbr.rel (0) target = $region37
    $region36: #{tpu_custom_call.1} parent=1 // pred_region
      %80 = dma.done [#allocation3], 512
    $region37: #{tpu_custom_call.1} parent=1 // pred_fallthru
      _
    // Predicated region
    $region38: #{tpu_custom_call.1} parent=1 // pred_check
      _
    $region39: #{tpu_custom_call.1} parent=1 // pred_check_branch
      %82 = sbr.rel (0) target = $region41
    $region40: #{tpu_custom_call.1} parent=1 // pred_region
      %84 = dma.done [#allocation6], 6144
    $region41: #{tpu_custom_call.1} parent=1 // pred_fallthru
      _
    // Predicated region
    $region42: #{tpu_custom_call.1} parent=1 // pred_check
      _
    $region43: #{tpu_custom_call.1} parent=1 // pred_check_branch
      %86 = sbr.rel (0) target = $region45
    $region44: #{tpu_custom_call.1} parent=1 // pred_region
      %88 = dma.done [#allocation6], 6144
    $region45: #{tpu_custom_call.1} parent=1 // pred_fallthru
      _
    // Predicated region
    $region46: #{tpu_custom_call.1} parent=1 // pred_check
      _
    $region47: #{tpu_custom_call.1} parent=1 // pred_check_branch
      %90 = sbr.rel (0) target = $region49
    $region48: #{tpu_custom_call.1} parent=1 // pred_region
      %92 = dma.done [#allocation9], 2048
    $region49: #{tpu_custom_call.1} parent=1 // pred_fallthru
      _
    %v93 = vld [vmem:[#allocation2] sm:$0xff]
    %v94 = vld [vmem:[#allocation2 + $0x8] sm:$0xff]
    %v95 = vld [vmem:[#allocation2 + $0x10] sm:$0xff]
    %v96 = vld [vmem:[#allocation2 + $0x18] sm:$0xff]
    %v97 = vlaneseq
    %v98 = vshrl.u32 %v97, 7
    %v99 = vadd.s32 %v98, 8
    %v100 = vadd.s32 %v98, 16
    %v101 = vadd.s32 %v98, 24
    %vm102 = vcmp.lt.s32.totalorder %v98, 0
    %v103 = vsub.s32 0, %v98
    %v104 = vsel %vm102, %v103, %v98
    %v105 = vshrl.u32 %v104, 4
    %v106 = vand.u32 %v104, 15
    %v107 = vsub.s32 0, %v106
    %v108 = vsel %vm102, %v107, %v106
    %vm109 = vcmp.lt.s32.totalorder %v99, 0
    %v110 = vsub.s32 0, %v99
    %v111 = vsel %vm109, %v110, %v99
    %v112 = vshrl.u32 %v111, 4
    %v113 = vand.u32 %v111, 15
    %v114 = vsub.s32 0, %v113
    %v115 = vsel %vm109, %v114, %v113
    %vm116 = vcmp.lt.s32.totalorder %v100, 0
    %v117 = vsub.s32 0, %v100
    %v118 = vsel %vm116, %v117, %v100
    %v119 = vshrl.u32 %v118, 4
    %v120 = vand.u32 %v118, 15
    %v121 = vsub.s32 0, %v120
    %v122 = vsel %vm116, %v121, %v120
    %vm123 = vcmp.lt.s32.totalorder %v101, 0
    %v124 = vsub.s32 0, %v101
    %v125 = vsel %vm123, %v124, %v101
    %v126 = vshrl.u32 %v125, 4
    %v127 = vand.u32 %v125, 15
    %v128 = vsub.s32 0, %v127
    %v129 = vsel %vm123, %v128, %v127
    %vm130 = vcmp.ne.s32.totalorder %v108, 0
    %vm131 = vcmp.ne.s32.totalorder %v115, 0
    %vm132 = vcmp.ne.s32.totalorder %v122, 0
    %vm133 = vcmp.ne.s32.totalorder %v129, 0
    %vm134 = vcmp.lt.s32.totalorder %v108, 0
    %vm135 = vcmp.lt.s32.totalorder %v115, 0
    %vm136 = vcmp.lt.s32.totalorder %v122, 0
    %vm137 = vcmp.lt.s32.totalorder %v129, 0
    %vm138 = vmand %vm134, %vm130
    %vm139 = vmand %vm135, %vm131
    %vm140 = vmand %vm136, %vm132
    %vm141 = vmand %vm137, %vm133
    %v142 = vadd.s32 %v108, 16
    %v143 = vadd.s32 %v115, 16
    %v144 = vadd.s32 %v122, 16
    %v145 = vadd.s32 %v129, 16
    %v146 = vsel %vm138, %v142, %v108
    %v147 = vsel %vm139, %v143, %v115
    %v148 = vsel %vm140, %v144, %v122
    %v149 = vsel %vm141, %v145, %v129
    %vm150 = vcmp.eq.s32.totalorder %v146, 0
    %vm151 = vcmp.eq.s32.totalorder %v147, 0
    %vm152 = vcmp.eq.s32.totalorder %v148, 0
    %vm153 = vcmp.eq.s32.totalorder %v149, 0
    %vm154 = vcmp.eq.s32.totalorder %v146, 15
    %vm155 = vcmp.eq.s32.totalorder %v147, 15
    %vm156 = vcmp.eq.s32.totalorder %v148, 15
    %vm157 = vcmp.eq.s32.totalorder %v149, 15
    %vm162 = vcmask 1040384
    %v163 = vrot.slane %v93, 7
    %v164 = vrot.slane %v94, 7
    %v165 = vsel %vm162, %v163, %v164
    %v166 = vrot.slane %v95, 7
    %v167 = vsel %vm162, %v164, %v166
    %v168 = vrot.slane %v96, 7
    %v169 = vsel %vm162, %v166, %v168
    %v174 = vsel %vm162, 0.0, %v163
    %v175 = vsel %vm150, 0.0, %v174
    %v176 = vsel %vm151, 0.0, %v165
    %v177 = vsel %vm152, 0.0, %v167
    %v178 = vsel %vm153, 0.0, %v169
    %vm179 = vcmask 1046528
    %v180 = vrot.slane %v93, 1
    %v181 = vrot.slane %v94, 1
    %v182 = vsel %vm179, %v180, %v181
    %v183 = vrot.slane %v95, 1
    %v184 = vsel %vm179, %v181, %v183
    %v185 = vrot.slane %v96, 1
    %v186 = vsel %vm179, %v183, %v185
    %v191 = vsel %vm179, %v185, 0.0
    %v192 = vsel %vm154, 0.0, %v182
    %v193 = vsel %vm155, 0.0, %v184
    %v194 = vsel %vm156, 0.0, %v186
    %v195 = vsel %vm157, 0.0, %v191
    %v196 = vld [vmem:[#allocation5] sm:$0xff]
    %v197 = vld [vmem:[#allocation5 + $0x8] sm:$0xff]
    %v198 = vld [vmem:[#allocation5 + $0x10] sm:$0xff]
    %v199 = vld [vmem:[#allocation5 + $0x18] sm:$0xff]
    %v200 = vld [vmem:[#allocation5 + $0x20] sm:$0xff]
    %v201 = vld [vmem:[#allocation5 + $0x28] sm:$0xff]
    %v202 = vld [vmem:[#allocation5 + $0x30] sm:$0xff]
    %v203 = vld [vmem:[#allocation5 + $0x38] sm:$0xff]
    %v204 = vld [vmem:[#allocation5 + $0x40] sm:$0xff]
    %v205 = vld [vmem:[#allocation5 + $0x48] sm:$0xff]
    %v206 = vld [vmem:[#allocation5 + $0x50] sm:$0xff]
    %v207 = vld [vmem:[#allocation5 + $0x58] sm:$0xff]
    %v208 = vld [vmem:[#allocation5 + $0x60] sm:$0xff]
    %v209 = vld [vmem:[#allocation5 + $0x68] sm:$0xff]
    %v210 = vld [vmem:[#allocation5 + $0x70] sm:$0xff]
    %v211 = vld [vmem:[#allocation5 + $0x78] sm:$0xff]
    %v212 = vld [vmem:[#allocation5 + $0x80] sm:$0xff]
    %v213 = vld [vmem:[#allocation5 + $0x88] sm:$0xff]
    %v214 = vld [vmem:[#allocation5 + $0x90] sm:$0xff]
    %v215 = vld [vmem:[#allocation5 + $0x98] sm:$0xff]
    %v216 = vld [vmem:[#allocation5 + $0xa0] sm:$0xff]
    %v217 = vld [vmem:[#allocation5 + $0xa8] sm:$0xff]
    %v218 = vld [vmem:[#allocation5 + $0xb0] sm:$0xff]
    %v219 = vld [vmem:[#allocation5 + $0xb8] sm:$0xff]
    %v220 = vld [vmem:[#allocation5 + $0xc0] sm:$0xff]
    %v221 = vld [vmem:[#allocation5 + $0xc8] sm:$0xff]
    %v222 = vld [vmem:[#allocation5 + $0xd0] sm:$0xff]
    %v223 = vld [vmem:[#allocation5 + $0xd8] sm:$0xff]
    %v224 = vld [vmem:[#allocation5 + $0xe0] sm:$0xff]
    %v225 = vld [vmem:[#allocation5 + $0xe8] sm:$0xff]
    %v226 = vld [vmem:[#allocation5 + $0xf0] sm:$0xff]
    %v227 = vld [vmem:[#allocation5 + $0xf8] sm:$0xff]
    %v228 = vld [vmem:[#allocation5 + $0x100] sm:$0xff]
    %v229 = vld [vmem:[#allocation5 + $0x108] sm:$0xff]
    %v230 = vld [vmem:[#allocation5 + $0x110] sm:$0xff]
    %v231 = vld [vmem:[#allocation5 + $0x118] sm:$0xff]
    %v232 = vld [vmem:[#allocation5 + $0x120] sm:$0xff]
    %v233 = vld [vmem:[#allocation5 + $0x128] sm:$0xff]
    %v234 = vld [vmem:[#allocation5 + $0x130] sm:$0xff]
    %v235 = vld [vmem:[#allocation5 + $0x138] sm:$0xff]
    %v236 = vld [vmem:[#allocation5 + $0x140] sm:$0xff]
    %v237 = vld [vmem:[#allocation5 + $0x148] sm:$0xff]
    %v238 = vld [vmem:[#allocation5 + $0x150] sm:$0xff]
    %v239 = vld [vmem:[#allocation5 + $0x158] sm:$0xff]
    %v240 = vld [vmem:[#allocation5 + $0x160] sm:$0xff]
    %v241 = vld [vmem:[#allocation5 + $0x168] sm:$0xff]
    %v242 = vld [vmem:[#allocation5 + $0x170] sm:$0xff]
    %v243 = vld [vmem:[#allocation5 + $0x178] sm:$0xff]
    %244 = vmatpush.msra.mxu0 %v211
    %245 = vmatpush.msra.mxu0 %v210
    %246 = vmatpush.msra.mxu0 %v209
    %247 = vmatpush.msra.mxu0 %v208
    %248 = vmatpush.msra.mxu0 %v207
    %249 = vmatpush.msra.mxu0 %v206
    %250 = vmatpush.msra.mxu0 %v205
    %251 = vmatpush.msra.mxu0 %v204
    %252 = vmatpush.msra.mxu0 %v203
    %253 = vmatpush.msra.mxu0 %v202
    %254 = vmatpush.msra.mxu0 %v201
    %255 = vmatpush.msra.mxu0 %v200
    %256 = vmatpush.msra.mxu0 %v199
    %257 = vmatpush.msra.mxu0 %v198
    %258 = vmatpush.msra.mxu0 %v197
    %259 = vmatpush.msra.mxu0 %v196
    %260 = vmatmul.f32.gmra.mxu0 %v175
    %v261 = vpop.f32.mrf.mxu0
    %v262 = vadd.f32 0.0, %v261
    %263 = vmatmul.f32.gmra.mxu0 %v176
    %v264 = vpop.f32.mrf.mxu0
    %v265 = vadd.f32 0.0, %v264
    %266 = vmatmul.f32.gmra.mxu0 %v177
    %v267 = vpop.f32.mrf.mxu0
    %v268 = vadd.f32 0.0, %v267
    %269 = vmatmul.f32.gmra.mxu0 %v178
    %v270 = vpop.f32.mrf.mxu0
    %v271 = vadd.f32 0.0, %v270
    %272 = vdwg.mxu0
    %273 = vmatpush.msra.mxu0 %v227
    %274 = vmatpush.msra.mxu0 %v226
    %275 = vmatpush.msra.mxu0 %v225
    %276 = vmatpush.msra.mxu0 %v224
    %277 = vmatpush.msra.mxu0 %v223
    %278 = vmatpush.msra.mxu0 %v222
    %279 = vmatpush.msra.mxu0 %v221
    %280 = vmatpush.msra.mxu0 %v220
    %281 = vmatpush.msra.mxu0 %v219
    %282 = vmatpush.msra.mxu0 %v218
    %283 = vmatpush.msra.mxu0 %v217
    %284 = vmatpush.msra.mxu0 %v216
    %285 = vmatpush.msra.mxu0 %v215
    %286 = vmatpush.msra.mxu0 %v214
    %287 = vmatpush.msra.mxu0 %v213
    %288 = vmatpush.msra.mxu0 %v212
    %289 = vmatmul.f32.gmra.mxu0 %v93
    %v290 = vpop.f32.mrf.mxu0
    %v291 = vadd.f32 %v262, %v290
    %292 = vmatmul.f32.gmra.mxu0 %v94
    %v293 = vpop.f32.mrf.mxu0
    %v294 = vadd.f32 %v265, %v293
    %295 = vmatmul.f32.gmra.mxu0 %v95
    %v296 = vpop.f32.mrf.mxu0
    %v297 = vadd.f32 %v268, %v296
    %298 = vmatmul.f32.gmra.mxu0 %v96
    %v299 = vpop.f32.mrf.mxu0
    %v300 = vadd.f32 %v271, %v299
    %301 = vdwg.mxu0
    %302 = vmatpush.msra.mxu0 %v243
    %303 = vmatpush.msra.mxu0 %v242
    %304 = vmatpush.msra.mxu0 %v241
    %305 = vmatpush.msra.mxu0 %v240
    %306 = vmatpush.msra.mxu0 %v239
    %307 = vmatpush.msra.mxu0 %v238
    %308 = vmatpush.msra.mxu0 %v237
    %309 = vmatpush.msra.mxu0 %v236
    %310 = vmatpush.msra.mxu0 %v235
    %311 = vmatpush.msra.mxu0 %v234
    %312 = vmatpush.msra.mxu0 %v233
    %313 = vmatpush.msra.mxu0 %v232
    %314 = vmatpush.msra.mxu0 %v231
    %315 = vmatpush.msra.mxu0 %v230
    %316 = vmatpush.msra.mxu0 %v229
    %317 = vmatpush.msra.mxu0 %v228
    %318 = vmatmul.f32.gmra.mxu0 %v192
    %v319 = vpop.f32.mrf.mxu0
    %v320 = vadd.f32 %v291, %v319
    %321 = vmatmul.f32.gmra.mxu0 %v193
    %v322 = vpop.f32.mrf.mxu0
    %v323 = vadd.f32 %v294, %v322
    %324 = vmatmul.f32.gmra.mxu0 %v194
    %v325 = vpop.f32.mrf.mxu0
    %v326 = vadd.f32 %v297, %v325
    %327 = vmatmul.f32.gmra.mxu0 %v195
    %v328 = vpop.f32.mrf.mxu0
    %v329 = vadd.f32 %v300, %v328
    %330 = vdwg.mxu0
    %v331 = vadd.f32 %v320, %v323
    %v332 = vadd.f32 %v331, %v326
    %v333 = vadd.f32 %v332, %v329
    %v334 = vrot.slane %v333, 4
    %v335 = vadd.f32 %v333, %v334
    %v336 = vrot.slane %v335, 2
    %v337 = vadd.f32 %v335, %v336
    %v338 = vrot.slane %v337, 1
    %v339 = vadd.f32 %v337, %v338
    %v340 = vmul.f32 %v320, %v320
    %v341 = vmul.f32 %v323, %v323
    %v342 = vmul.f32 %v326, %v326
    %v343 = vmul.f32 %v329, %v329
    %v344 = vadd.f32 %v340, %v341
    %v345 = vadd.f32 %v344, %v342
    %v346 = vadd.f32 %v345, %v343
    %v347 = vrot.slane %v346, 4
    %v348 = vadd.f32 %v346, %v347
    %v349 = vrot.slane %v348, 2
    %v350 = vadd.f32 %v348, %v349
    %v351 = vrot.slane %v350, 1
    %v352 = vadd.f32 %v350, %v351
    %v353 = vsel %vm162, %v339, %v352
    %v354 = vld [vmem:[#allocation8] sm:$0xff]
    %v355 = vld [vmem:[#allocation8 + $0x8] sm:$0xff]
    %v356 = vld [vmem:[#allocation8 + $0x10] sm:$0xff]
    %v357 = vld [vmem:[#allocation8 + $0x18] sm:$0xff]
    %v358 = vld [vmem:[#allocation8 + $0x20] sm:$0xff]
    %v359 = vld [vmem:[#allocation8 + $0x28] sm:$0xff]
    %v360 = vld [vmem:[#allocation8 + $0x30] sm:$0xff]
    %v361 = vld [vmem:[#allocation8 + $0x38] sm:$0xff]
    %v362 = vld [vmem:[#allocation8 + $0x40] sm:$0xff]
    %v363 = vld [vmem:[#allocation8 + $0x48] sm:$0xff]
    %v364 = vld [vmem:[#allocation8 + $0x50] sm:$0xff]
    %v365 = vld [vmem:[#allocation8 + $0x58] sm:$0xff]
    %v366 = vld [vmem:[#allocation8 + $0x60] sm:$0xff]
    %v367 = vld [vmem:[#allocation8 + $0x68] sm:$0xff]
    %v368 = vld [vmem:[#allocation8 + $0x70] sm:$0xff]
    %v369 = vld [vmem:[#allocation8 + $0x78] sm:$0xff]
    %370 = vmatpush.msra.mxu0 %v369
    %371 = vmatpush.msra.mxu0 %v368
    %372 = vmatpush.msra.mxu0 %v367
    %373 = vmatpush.msra.mxu0 %v366
    %374 = vmatpush.msra.mxu0 %v365
    %375 = vmatpush.msra.mxu0 %v364
    %376 = vmatpush.msra.mxu0 %v363
    %377 = vmatpush.msra.mxu0 %v362
    %378 = vmatpush.msra.mxu0 %v361
    %379 = vmatpush.msra.mxu0 %v360
    %380 = vmatpush.msra.mxu0 %v359
    %381 = vmatpush.msra.mxu0 %v358
    %382 = vmatpush.msra.mxu0 %v357
    %383 = vmatpush.msra.mxu0 %v356
    %384 = vmatpush.msra.mxu0 %v355
    %385 = vmatpush.msra.mxu0 %v354
    %386 = vmatmul.f32.gmra.mxu0 %v353
    %v387 = vpop.f32.mrf.mxu0
    %v388 = vadd.f32 0.0, %v387
    %389 = vdwg.mxu0
    %v390 = vmul.f32 %v388, 0.001953125
    %v391 = vmul.f32 %v390, %v390
    %v393 = vrot.slane %v391, 7
    %v395 = vsub.f32 %v390, %v393
    %v396 = vmax.f32 %v395, 0.0
    %v397 = vperm.slane %v390, 0
    %v398 = vsub.f32 %v320, %v397
    %v399 = vsub.f32 %v323, %v397
    %v400 = vsub.f32 %v326, %v397
    %v401 = vsub.f32 %v329, %v397
    %v402 = vadd.f32 %v396, 1e-05
    %v403 = vrsqrt.pop %v402
    %v404 = vmul.f32 %v403, %v402
    %v405 = vmul.f32 %v404, %v403
    %v406 = vmul.f32 0.5, %v405
    %v407 = vsub.f32 1.5, %v406
    %v408 = vmul.f32 %v403, %v407
    %vm409 = vweird.f32 %v402
    %vm410 = vweird.f32 %v403
    %vm411 = vmor %vm409, %vm410
    %v412 = vsel %vm411, %v403, %v408
    %v413 = vperm.slane %v412, 1
    %v414 = vmul.f32 %v398, %v413
    %v415 = vmul.f32 %v399, %v413
    %v416 = vmul.f32 %v400, %v413
    %v417 = vmul.f32 %v401, %v413
    %v418 = vld [vmem:[%s4] sm:$0x1]
    %v420 = vperm.slane %v418, 0
    %v422 = vmul.f32 %v414, %v420
    %v423 = vmul.f32 %v415, %v420
    %v424 = vmul.f32 %v416, %v420
    %v425 = vmul.f32 %v417, %v420
    %v426 = vld [vmem:[%s5] sm:$0x1]
    %v428 = vperm.slane %v426, 0
    %v430 = vadd.f32 %v422, %v428
    %v431 = vadd.f32 %v423, %v428
    %v432 = vadd.f32 %v424, %v428
    %v433 = vadd.f32 %v425, %v428
    %v434 = vmax.f32 %v430, 0.0
    %v435 = vmax.f32 %v431, 0.0
    %v436 = vmax.f32 %v432, 0.0
    %v437 = vmax.f32 %v433, 0.0
    %v442 = vrot.slane %v434, 7
    %v443 = vrot.slane %v435, 7
    %v444 = vsel %vm162, %v442, %v443
    %v445 = vrot.slane %v436, 7
    %v446 = vsel %vm162, %v443, %v445
    %v447 = vrot.slane %v437, 7
    %v448 = vsel %vm162, %v445, %v447
    %v453 = vsel %vm162, 0.0, %v442
    %v454 = vsel %vm150, 0.0, %v453
    %v455 = vsel %vm151, 0.0, %v444
    %v456 = vsel %vm152, 0.0, %v446
    %v457 = vsel %vm153, 0.0, %v448
    %v458 = vrot.slane %v434, 1
    %v459 = vrot.slane %v435, 1
    %v460 = vsel %vm179, %v458, %v459
    %v461 = vrot.slane %v436, 1
    %v462 = vsel %vm179, %v459, %v461
    %v463 = vrot.slane %v437, 1
    %v464 = vsel %vm179, %v461, %v463
    %v469 = vsel %vm179, %v463, 0.0
    %v470 = vsel %vm154, 0.0, %v460
    %v471 = vsel %vm155, 0.0, %v462
    %v472 = vsel %vm156, 0.0, %v464
    %v473 = vsel %vm157, 0.0, %v469
    %v474 = vld [vmem:[#allocation7] sm:$0xff]
    %v475 = vld [vmem:[#allocation7 + $0x8] sm:$0xff]
    %v476 = vld [vmem:[#allocation7 + $0x10] sm:$0xff]
    %v477 = vld [vmem:[#allocation7 + $0x18] sm:$0xff]
    %v478 = vld [vmem:[#allocation7 + $0x20] sm:$0xff]
    %v479 = vld [vmem:[#allocation7 + $0x28] sm:$0xff]
    %v480 = vld [vmem:[#allocation7 + $0x30] sm:$0xff]
    %v481 = vld [vmem:[#allocation7 + $0x38] sm:$0xff]
    %v482 = vld [vmem:[#allocation7 + $0x40] sm:$0xff]
    %v483 = vld [vmem:[#allocation7 + $0x48] sm:$0xff]
    %v484 = vld [vmem:[#allocation7 + $0x50] sm:$0xff]
    %v485 = vld [vmem:[#allocation7 + $0x58] sm:$0xff]
    %v486 = vld [vmem:[#allocation7 + $0x60] sm:$0xff]
    %v487 = vld [vmem:[#allocation7 + $0x68] sm:$0xff]
    %v488 = vld [vmem:[#allocation7 + $0x70] sm:$0xff]
    %v489 = vld [vmem:[#allocation7 + $0x78] sm:$0xff]
    %v490 = vld [vmem:[#allocation7 + $0x80] sm:$0xff]
    %v491 = vld [vmem:[#allocation7 + $0x88] sm:$0xff]
    %v492 = vld [vmem:[#allocation7 + $0x90] sm:$0xff]
    %v493 = vld [vmem:[#allocation7 + $0x98] sm:$0xff]
    %v494 = vld [vmem:[#allocation7 + $0xa0] sm:$0xff]
    %v495 = vld [vmem:[#allocation7 + $0xa8] sm:$0xff]
    %v496 = vld [vmem:[#allocation7 + $0xb0] sm:$0xff]
    %v497 = vld [vmem:[#allocation7 + $0xb8] sm:$0xff]
    %v498 = vld [vmem:[#allocation7 + $0xc0] sm:$0xff]
    %v499 = vld [vmem:[#allocation7 + $0xc8] sm:$0xff]
    %v500 = vld [vmem:[#allocation7 + $0xd0] sm:$0xff]
    %v501 = vld [vmem:[#allocation7 + $0xd8] sm:$0xff]
    %v502 = vld [vmem:[#allocation7 + $0xe0] sm:$0xff]
    %v503 = vld [vmem:[#allocation7 + $0xe8] sm:$0xff]
    %v504 = vld [vmem:[#allocation7 + $0xf0] sm:$0xff]
    %v505 = vld [vmem:[#allocation7 + $0xf8] sm:$0xff]
    %v506 = vld [vmem:[#allocation7 + $0x100] sm:$0xff]
    %v507 = vld [vmem:[#allocation7 + $0x108] sm:$0xff]
    %v508 = vld [vmem:[#allocation7 + $0x110] sm:$0xff]
    %v509 = vld [vmem:[#allocation7 + $0x118] sm:$0xff]
    %v510 = vld [vmem:[#allocation7 + $0x120] sm:$0xff]
    %v511 = vld [vmem:[#allocation7 + $0x128] sm:$0xff]
    %v512 = vld [vmem:[#allocation7 + $0x130] sm:$0xff]
    %v513 = vld [vmem:[#allocation7 + $0x138] sm:$0xff]
    %v514 = vld [vmem:[#allocation7 + $0x140] sm:$0xff]
    %v515 = vld [vmem:[#allocation7 + $0x148] sm:$0xff]
    %v516 = vld [vmem:[#allocation7 + $0x150] sm:$0xff]
    %v517 = vld [vmem:[#allocation7 + $0x158] sm:$0xff]
    %v518 = vld [vmem:[#allocation7 + $0x160] sm:$0xff]
    %v519 = vld [vmem:[#allocation7 + $0x168] sm:$0xff]
    %v520 = vld [vmem:[#allocation7 + $0x170] sm:$0xff]
    %v521 = vld [vmem:[#allocation7 + $0x178] sm:$0xff]
    %522 = vmatpush.msra.mxu0 %v489
    %523 = vmatpush.msra.mxu0 %v488
    %524 = vmatpush.msra.mxu0 %v487
    %525 = vmatpush.msra.mxu0 %v486
    %526 = vmatpush.msra.mxu0 %v485
    %527 = vmatpush.msra.mxu0 %v484
    %528 = vmatpush.msra.mxu0 %v483
    %529 = vmatpush.msra.mxu0 %v482
    %530 = vmatpush.msra.mxu0 %v481
    %531 = vmatpush.msra.mxu0 %v480
    %532 = vmatpush.msra.mxu0 %v479
    %533 = vmatpush.msra.mxu0 %v478
    %534 = vmatpush.msra.mxu0 %v477
    %535 = vmatpush.msra.mxu0 %v476
    %536 = vmatpush.msra.mxu0 %v475
    %537 = vmatpush.msra.mxu0 %v474
    %538 = vmatmul.f32.gmra.mxu0 %v454
    %v539 = vpop.f32.mrf.mxu0
    %v540 = vadd.f32 0.0, %v539
    %541 = vmatmul.f32.gmra.mxu0 %v455
    %v542 = vpop.f32.mrf.mxu0
    %v543 = vadd.f32 0.0, %v542
    %544 = vmatmul.f32.gmra.mxu0 %v456
    %v545 = vpop.f32.mrf.mxu0
    %v546 = vadd.f32 0.0, %v545
    %547 = vmatmul.f32.gmra.mxu0 %v457
    %v548 = vpop.f32.mrf.mxu0
    %v549 = vadd.f32 0.0, %v548
    %550 = vdwg.mxu0
    %551 = vmatpush.msra.mxu0 %v505
    %552 = vmatpush.msra.mxu0 %v504
    %553 = vmatpush.msra.mxu0 %v503
    %554 = vmatpush.msra.mxu0 %v502
    %555 = vmatpush.msra.mxu0 %v501
    %556 = vmatpush.msra.mxu0 %v500
    %557 = vmatpush.msra.mxu0 %v499
    %558 = vmatpush.msra.mxu0 %v498
    %559 = vmatpush.msra.mxu0 %v497
    %560 = vmatpush.msra.mxu0 %v496
    %561 = vmatpush.msra.mxu0 %v495
    %562 = vmatpush.msra.mxu0 %v494
    %563 = vmatpush.msra.mxu0 %v493
    %564 = vmatpush.msra.mxu0 %v492
    %565 = vmatpush.msra.mxu0 %v491
    %566 = vmatpush.msra.mxu0 %v490
    %567 = vmatmul.f32.gmra.mxu0 %v434
    %v568 = vpop.f32.mrf.mxu0
    %v569 = vadd.f32 %v540, %v568
    %570 = vmatmul.f32.gmra.mxu0 %v435
    %v571 = vpop.f32.mrf.mxu0
    %v572 = vadd.f32 %v543, %v571
    %573 = vmatmul.f32.gmra.mxu0 %v436
    %v574 = vpop.f32.mrf.mxu0
    %v575 = vadd.f32 %v546, %v574
    %576 = vmatmul.f32.gmra.mxu0 %v437
    %v577 = vpop.f32.mrf.mxu0
    %v578 = vadd.f32 %v549, %v577
    %579 = vdwg.mxu0
    %580 = vmatpush.msra.mxu0 %v521
    %581 = vmatpush.msra.mxu0 %v520
    %582 = vmatpush.msra.mxu0 %v519
    %583 = vmatpush.msra.mxu0 %v518
    %584 = vmatpush.msra.mxu0 %v517
    %585 = vmatpush.msra.mxu0 %v516
    %586 = vmatpush.msra.mxu0 %v515
    %587 = vmatpush.msra.mxu0 %v514
    %588 = vmatpush.msra.mxu0 %v513
    %589 = vmatpush.msra.mxu0 %v512
    %590 = vmatpush.msra.mxu0 %v511
    %591 = vmatpush.msra.mxu0 %v510
    %592 = vmatpush.msra.mxu0 %v509
    %593 = vmatpush.msra.mxu0 %v508
    %594 = vmatpush.msra.mxu0 %v507
    %595 = vmatpush.msra.mxu0 %v506
    %596 = vmatmul.f32.gmra.mxu0 %v470
    %v597 = vpop.f32.mrf.mxu0
    %v598 = vadd.f32 %v569, %v597
    %599 = vmatmul.f32.gmra.mxu0 %v471
    %v600 = vpop.f32.mrf.mxu0
    %v601 = vadd.f32 %v572, %v600
    %602 = vmatmul.f32.gmra.mxu0 %v472
    %v603 = vpop.f32.mrf.mxu0
    %v604 = vadd.f32 %v575, %v603
    %605 = vmatmul.f32.gmra.mxu0 %v473
    %v606 = vpop.f32.mrf.mxu0
    %v607 = vadd.f32 %v578, %v606
    %608 = vdwg.mxu0
    %v609 = vadd.f32 %v598, %v601
    %v610 = vadd.f32 %v609, %v604
    %v611 = vadd.f32 %v610, %v607
    %v612 = vrot.slane %v611, 4
    %v613 = vadd.f32 %v611, %v612
    %v614 = vrot.slane %v613, 2
    %v615 = vadd.f32 %v613, %v614
    %v616 = vrot.slane %v615, 1
    %v617 = vadd.f32 %v615, %v616
    %v618 = vmul.f32 %v598, %v598
    %v619 = vmul.f32 %v601, %v601
    %v620 = vmul.f32 %v604, %v604
    %v621 = vmul.f32 %v607, %v607
    %v622 = vadd.f32 %v618, %v619
    %v623 = vadd.f32 %v622, %v620
    %v624 = vadd.f32 %v623, %v621
    %v625 = vrot.slane %v624, 4
    %v626 = vadd.f32 %v624, %v625
    %v627 = vrot.slane %v626, 2
    %v628 = vadd.f32 %v626, %v627
    %v629 = vrot.slane %v628, 1
    %v630 = vadd.f32 %v628, %v629
    %v631 = vsel %vm162, %v617, %v630
    %632 = vmatpush.msra.mxu0 %v369
    %633 = vmatpush.msra.mxu0 %v368
    %634 = vmatpush.msra.mxu0 %v367
    %635 = vmatpush.msra.mxu0 %v366
    %636 = vmatpush.msra.mxu0 %v365
    %637 = vmatpush.msra.mxu0 %v364
    %638 = vmatpush.msra.mxu0 %v363
    %639 = vmatpush.msra.mxu0 %v362
    %640 = vmatpush.msra.mxu0 %v361
    %641 = vmatpush.msra.mxu0 %v360
    %642 = vmatpush.msra.mxu0 %v359
    %643 = vmatpush.msra.mxu0 %v358
    %644 = vmatpush.msra.mxu0 %v357
    %645 = vmatpush.msra.mxu0 %v356
    %646 = vmatpush.msra.mxu0 %v355
    %647 = vmatpush.msra.mxu0 %v354
    %648 = vmatmul.f32.gmra.mxu0 %v631
    %v649 = vpop.f32.mrf.mxu0
    %v650 = vadd.f32 0.0, %v649
    %651 = vdwg.mxu0
    %v652 = vmul.f32 %v650, 0.001953125
    %v653 = vmul.f32 %v652, %v652
    %v655 = vrot.slane %v653, 7
    %v657 = vsub.f32 %v652, %v655
    %v658 = vmax.f32 %v657, 0.0
    %v659 = vperm.slane %v652, 0
    %v660 = vsub.f32 %v598, %v659
    %v661 = vsub.f32 %v601, %v659
    %v662 = vsub.f32 %v604, %v659
    %v663 = vsub.f32 %v607, %v659
    %v664 = vadd.f32 %v658, 1e-05
    %v665 = vrsqrt.pop %v664
    %v666 = vmul.f32 %v665, %v664
    %v667 = vmul.f32 %v666, %v665
    %v668 = vmul.f32 0.5, %v667
    %v669 = vsub.f32 1.5, %v668
    %v670 = vmul.f32 %v665, %v669
    %vm671 = vweird.f32 %v664
    %vm672 = vweird.f32 %v665
    %vm673 = vmor %vm671, %vm672
    %v674 = vsel %vm673, %v665, %v670
    %v675 = vperm.slane %v674, 1
    %v676 = vmul.f32 %v660, %v675
    %v677 = vmul.f32 %v661, %v675
    %v678 = vmul.f32 %v662, %v675
    %v679 = vmul.f32 %v663, %v675
    %v680 = vld [vmem:[%s6] sm:$0x1]
    %v682 = vperm.slane %v680, 0
    %v684 = vmul.f32 %v676, %v682
    %v685 = vmul.f32 %v677, %v682
    %v686 = vmul.f32 %v678, %v682
    %v687 = vmul.f32 %v679, %v682
    %v688 = vld [vmem:[%s7] sm:$0x1]
    %v690 = vperm.slane %v688, 0
    %v692 = vadd.f32 %v684, %v690
    %v693 = vadd.f32 %v685, %v690
    %v694 = vadd.f32 %v686, %v690
    %v695 = vadd.f32 %v687, %v690
    %v696 = vadd.f32 %v692, %v93
    %v697 = vadd.f32 %v693, %v94
    %v698 = vadd.f32 %v694, %v95
    %v699 = vadd.f32 %v695, %v96
    %v700 = vmax.f32 %v696, 0.0
    %v701 = vmax.f32 %v697, 0.0
    %v702 = vmax.f32 %v698, 0.0
    %v703 = vmax.f32 %v699, 0.0
    %704 = vst [vmem:[#allocation10] sm:$0xff] %v700
    %705 = vst [vmem:[#allocation10 + $0x8] sm:$0xff] %v701
    %706 = vst [vmem:[#allocation10 + $0x10] sm:$0xff] %v702
    %707 = vst [vmem:[#allocation10 + $0x18] sm:$0xff] %v703
    // Predicated region
    $region50: #{tpu_custom_call.1} parent=1 // pred_check
      _
    $region51: #{tpu_custom_call.1} parent=1 // pred_check_branch
      %709 = sbr.rel (0) target = $region53
    $region52: #{tpu_custom_call.1} parent=1 // pred_region
      %711 = vsyncadd [#allocation4], 0
      %s712 = sshll.u32 [#allocation10], 4
      %s713 = int_to_ptr.vmem [resolvable:$true] %s712
      %s714 = sshll.u32 %s8, 4
      %s715 = int_to_ptr.hbm [resolvable:$true] %s714
      %720 = dma.vmem_to_hbm [thread:$0]  %s713, 512, %s715, [#allocation4], 128, 128, 8
    $region53: #{tpu_custom_call.1} parent=1 // pred_fallthru
      _
    // Predicated region
    $region54: #{tpu_custom_call.1} parent=1 // pred_check
      _
    $region55: #{tpu_custom_call.1} parent=1 // pred_check_branch
      %722 = sbr.rel (0) target = $region57
    $region56: #{tpu_custom_call.1} parent=1 // pred_region
      %724 = dma.done [#allocation4], 512
    $region57: #{tpu_custom_call.1} parent=1 // pred_fallthru
      _
    %725 = vsyncpa [#allocation3], 1
    %726 = vsyncpa [#allocation6], 1
    %727 = vsyncpa [#allocation9], 1
    %728 = vsyncpa [#allocation4], 1

</llo_original>
